<compile_context>
chip_gen: v5e
topology: v5e:2x2
jax: 0.10.0
libtpu: 0.0.40
codegen_flags: <defaults>
</compile_context>

<pallas_src>
import jax
import jax.numpy as jnp
from jax.experimental import pallas as pl
from jax.experimental.pallas import tpu as pltpu

# Non-trainable buffers taken verbatim from the PyTorch module's __init__.
SCALER_SCALE = jnp.array([
    5.009924761018587, 1.0018188597242355, 0.010292174692060528,
    0.16288265085698453, 0.04559109321673852, 0.1682473240927026,
    0.15967887456557378, 0.0015586544595969428, 0.010722259319073196,
    0.6364301120505811, 0.6360764093711175, 0.6353961809445742,
    0.31929392780031585, 0.6707174031592557, 0.6534433964656056,
    0.002462418781983633, 12.514212104101508], dtype=jnp.float32)

SCALER_MIN = jnp.array([
    0.49977842782898685, 0.4994941706919238, -0.020606080641338675,
    0.5002919753099604, -0.009400341457049127, 0.49997065712986616,
    0.4996155459607123, -0.033067499716928135, -0.05139944510782373,
    -0.0005472203187390946, -8.2416517989992e-05, -3.700403245065246e-05,
    -0.0003170755908927612, -1.2027876307280915e-06, -7.862871723487552e-05,
    -1.7337162673375185e-06, -11.51308429548884], dtype=jnp.float32)

NUM_FEATURES = 17
LANE = NUM_FEATURES * 128          # 2176 = lcm(17, 128): lane-dense last dim

# Feature pattern repeats every 17 flat elements and 2176 % 17 == 0, so
# TILED_*[c] == SCALER_*[c % 17] for every lane c of the (rows, 2176) view.
TILED_SCALE = jnp.tile(SCALER_SCALE, 128).reshape(1, LANE)   # (1, 2176) f32, 8.5 KiB
TILED_MIN = jnp.tile(SCALER_MIN, 128).reshape(1, LANE)


def _round_up(x: int, m: int) -> int:
    return ((x + m - 1) // m) * m


def _block_rows_max_and_vmem() -> tuple[int, int]:
    """Per-generation tile budget.

    512 rows x 2176 f32 ~= 4.5 MiB/block (double-buffered in+out ~18 MiB) is
    safe everywhere.  On v6e/v7x the faster HBM makes the ~0.35 us per-grid-
    step overhead visible, so use 1024-row blocks (~9 MiB, ~36 MiB pipelined)
    under a 48 MiB cap, which still fits v7x's 64 MiB physical VMEM.
    """
    try:
        kind = jax.devices()[0].device_kind.lower()
    except Exception:
        kind = ""
    if "v6" in kind or "v7" in kind:
        return 1024, 48 * 1024 * 1024
    return 512, 32 * 1024 * 1024


def _feature_scaler_kernel(x_ref, scale_ref, min_ref, o_ref):
    # Pure VPU elementwise FMA on full-width (block_rows, 2176) tiles.
    # Compute in f32 (required on v5e, free everywhere - kernel is HBM-bound),
    # store back in the output's dtype.
    x = x_ref[...].astype(jnp.float32)
    y = x * scale_ref[...] + min_ref[...]          # (1, 2176) broadcasts over rows
    o_ref[...] = y.astype(o_ref.dtype)


def feature_scaler(x: jax.Array, *, min_pallas_elems: int = 256 * 1024) -> jax.Array:
    """out = x * scaler_scale + scaler_min along the last axis (size 17).

    Pallas path is used only when it can be zero-copy (flat size a multiple of
    LANE) and large enough to amortize the fixed pallas_call overhead
    (>= min_pallas_elems); otherwise the plain XLA fusion (single HBM pass) is
    used, which is faster for small or LANE-ragged inputs.
    """
    assert x.shape[-1] == NUM_FEATURES, "last dim must be the 17 features"
    out_dtype = jnp.promote_types(x.dtype, jnp.float32)   # torch-style promotion
    total = x.size

    use_pallas = (total > 0) and (total % LANE == 0) and (total >= min_pallas_elems)
    if not use_pallas:
        # Small or LANE-ragged sizes: one fused XLA pass (1 read + 1 write)
        # beats a Pallas path that would need pad/slice/concat copies.
        y = x.astype(jnp.float32) * SCALER_SCALE + SCALER_MIN
        return y.astype(out_dtype)

    rows = total // LANE
    block_rows_max, vmem_limit = _block_rows_max_and_vmem()
    itemsize_in = jnp.dtype(x.dtype).itemsize
    itemsize_out = jnp.dtype(out_dtype).itemsize
    # Sub-32-bit dtypes pack along sublanes: keep blocks a whole packed-vreg
    # multiple so loads/stores stay unmasked (8 f32 / 16 bf16 / 32 int8).
    sublane = max(8, 32 // max(itemsize_in, 1))
    block_rows = min(block_rows_max, _round_up(rows, sublane))
    grid = (pl.cdiv(rows, block_rows),)    # partial last block is masked by Pallas

    # Zero-copy lane-dense view: contiguous row-major reshape is a free bitcast.
    x2d = x.reshape(rows, LANE)

    cost = pl.CostEstimate(
        flops=2 * rows * LANE,
        transcendentals=0,
        bytes_accessed=rows * LANE * (itemsize_in + itemsize_out) + 2 * LANE * 4,
    )

    out2d = pl.pallas_call(
        _feature_scaler_kernel,
        out_shape=jax.ShapeDtypeStruct((rows, LANE), out_dtype),
        grid=grid,
        in_specs=[
            pl.BlockSpec((block_rows, LANE), lambda i: (i, 0)),
            pl.BlockSpec((1, LANE), lambda i: (0, 0)),   # grid-invariant constant
            pl.BlockSpec((1, LANE), lambda i: (0, 0)),   # grid-invariant constant
        ],
        out_specs=pl.BlockSpec((block_rows, LANE), lambda i: (i, 0)),
        compiler_params=pltpu.CompilerParams(
            # Row blocks are fully independent; "parallel" lets a multi-TC part
            # (v7x) shard the grid.  If a v7x profile ever shows a single TC
            # active, switch this axis to pltpu.CORE_PARALLEL.
            dimension_semantics=("parallel",),
            vmem_limit_bytes=vmem_limit,
        ),
        cost_estimate=cost,
    )(x2d, TILED_SCALE, TILED_MIN)

    return out2d.reshape(x.shape)


if __name__ == "__main__":
    key = jax.random.PRNGKey(0)
    k1, k2, k3 = jax.random.split(key, 3)

    def ref(v):
        return v.astype(jnp.float32) * SCALER_SCALE + SCALER_MIN

    # (a) LANE-aligned batch (1024*17 = 8*2176): zero-copy Pallas path,
    #     sublane-aligned block, no masking.
    xa = jax.random.normal(k1, (1024, NUM_FEATURES), dtype=jnp.float32)
    ya = jax.block_until_ready(feature_scaler(xa, min_pallas_elems=0))
    assert ya.shape == xa.shape and ya.dtype == jnp.float32
    assert jnp.allclose(ya, ref(xa), rtol=1e-6, atol=1e-6)

    # (b) LANE-aligned but rows (21) not a sublane multiple: Pallas path with a
    #     masked partial block, still zero-copy (no pad, no output slice).
    xb = jax.random.normal(k2, (2688, NUM_FEATURES), dtype=jnp.float32)
    yb = jax.block_until_ready(feature_scaler(xb, min_pallas_elems=0))
    assert jnp.allclose(yb, ref(xb), rtol=1e-6, atol=1e-6)

    # (c) small / LANE-ragged batch: single-pass XLA fallback (no extra copies).
    xc = jax.random.normal(k3, (8, NUM_FEATURES), dtype=jnp.float32)
    yc = jax.block_until_ready(feature_scaler(xc))
    assert jnp.allclose(yc, ref(xc), rtol=1e-6, atol=1e-6)

    print("KERNEL_OK")
</pallas_src>

<mosaic_0001>
module attributes {stable_mosaic.version = 11 : i64} {
  func.func @_feature_scaler_kernel(%arg0: i32, %arg1: memref<8x2176xf32, #tpu.memory_space<vmem>>, %arg2: memref<1x2176xf32, #tpu.memory_space<vmem>>, %arg3: memref<1x2176xf32, #tpu.memory_space<vmem>>, %arg4: memref<8x2176xf32, #tpu.memory_space<vmem>>) attributes {dimension_semantics = [#tpu.dimension_semantics<parallel>], iteration_bounds = array<i64: 1>, scalar_prefetch = 0 : i64, scratch_operands = 0 : i64, tpu.core_type = #tpu.core_type<tc>, window_params = [{transform_indices = @transform_0, window_bounds = array<i64: 8, 2176>}, {pipeline_mode = #tpu.pipeline_mode<synchronous>, transform_indices = @transform_1, window_bounds = array<i64: 1, 2176>}, {pipeline_mode = #tpu.pipeline_mode<synchronous>, transform_indices = @transform_2, window_bounds = array<i64: 1, 2176>}, {transform_indices = @transform_3, window_bounds = array<i64: 8, 2176>}]} {
    %c0 = arith.constant 0 : index
    %c0_0 = arith.constant 0 : index
    %0 = vector.load %arg1[%c0, %c0_0] : memref<8x2176xf32, #tpu.memory_space<vmem>>, vector<8x2176xf32>
    %c0_1 = arith.constant 0 : index
    %c0_2 = arith.constant 0 : index
    %1 = vector.load %arg2[%c0_1, %c0_2] : memref<1x2176xf32, #tpu.memory_space<vmem>>, vector<1x2176xf32>
    %2 = vector.broadcast %1 : vector<1x2176xf32> to vector<8x2176xf32>
    %3 = arith.mulf %0, %2 : vector<8x2176xf32>
    %c0_3 = arith.constant 0 : index
    %c0_4 = arith.constant 0 : index
    %4 = vector.load %arg3[%c0_3, %c0_4] : memref<1x2176xf32, #tpu.memory_space<vmem>>, vector<1x2176xf32>
    %5 = vector.broadcast %4 : vector<1x2176xf32> to vector<8x2176xf32>
    %6 = arith.addf %3, %5 : vector<8x2176xf32>
    %c0_5 = arith.constant 0 : index
    %c0_6 = arith.constant 0 : index
    %7 = vector.load %arg4[%c0_5, %c0_6] : memref<8x2176xf32, #tpu.memory_space<vmem>>, vector<8x2176xf32>
    tpu.vector_store %arg4[%c0_5, %c0_6], %6 {strides = array<i32>} : memref<8x2176xf32, #tpu.memory_space<vmem>>, vector<8x2176xf32>,
    return
  }
  func.func @transform_0(%arg0: i32) -> (i32, i32) {
    %c0_i32 = arith.constant 0 : i32
    %c0_i32_0 = arith.constant 0 : i32
    return %arg0, %c0_i32 : i32, i32
  }
  func.func @transform_1(%arg0: i32) -> (i32, i32) {
    %c0_i32 = arith.constant 0 : i32
    %c0_i32_0 = arith.constant 0 : i32
    %c0_i32_1 = arith.constant 0 : i32
    return %c0_i32, %c0_i32_0 : i32, i32
  }
  func.func @transform_2(%arg0: i32) -> (i32, i32) {
    %c0_i32 = arith.constant 0 : i32
    %c0_i32_0 = arith.constant 0 : i32
    %c0_i32_1 = arith.constant 0 : i32
    return %c0_i32, %c0_i32_0 : i32, i32
  }
  func.func @transform_3(%arg0: i32) -> (i32, i32) {
    %c0_i32 = arith.constant 0 : i32
    %c0_i32_0 = arith.constant 0 : i32
    return %arg0, %c0_i32 : i32, i32
  }
}

</mosaic_0001>

<llo_original>
// kernel: tpu_custom_call.1
$region0: #{tpu_custom_call.1}
  #allocation0 [shape = 'u32[]', space=smem, size = 0x4, offset = 0x4, fixed_abs, tag = 'smem constant byte address 0x4 - core index']
  #allocation1 [shape = 'u32[72,128]{1,0:T(1,128)}', space=vmem, size = 0x9000, scoped, tag = 'internal scratch']
  %s0 = inlined_call_operand.hbm [shape: f32[8,2176], index: 0, kind: input, shape index: {}]
  %s1 = inlined_call_operand.hbm [shape: f32[1,2176], index: 1, kind: input, shape index: {}]
  %s2 = inlined_call_operand.hbm [shape: f32[1,2176], index: 2, kind: input, shape index: {}]
  %s3 = inlined_call_operand.hbm [shape: f32[8,2176], index: 3, kind: output, shape index: {}]
  %s4 = sld [smem:[#allocation0]]
  $region34: #{tpu_custom_call.1} parent=0
    _
  %s6 = ssub.s32 1, %s4
  %s7 = scalar_select 0, %s6, %s4
  $region1: #{tpu_custom_call.1} parent=0
    #allocation2 [shape = 'u8[69632]{0}', space=vmem, size = 0x11000, scoped, tag = 'input window, operand 0, single buffered']
    #allocation3 [shape = 's32[1]{0}', space=sflag, size = 0x4, scoped, tag = 'scoped memory for tpu_custom_call.1']
    #allocation4 [shape = 's32[1]{0}', space=sflag, size = 0x4, scoped, tag = 'scoped memory for tpu_custom_call.1']
    #allocation5 [shape = 'u8[8704]{0}', space=vmem, size = 0x2400, scoped, tag = 'input window, operand 1, single buffered']
    #allocation6 [shape = 's32[1]{0}', space=sflag, size = 0x4, scoped, tag = 'scoped memory for tpu_custom_call.1']
    #allocation7 [shape = 'u8[8704]{0}', space=vmem, size = 0x2400, scoped, tag = 'input window, operand 2, single buffered']
    #allocation8 [shape = 'u8[69632]{0}', space=vmem, size = 0x11000, scoped, tag = 'output window, operand 0, single buffered']
    %8 = vsyncpa [#allocation3], 0
    %9 = vsyncpa [#allocation6], 0
    %10 = vsyncpa [#allocation4], 0
    // Predicated region
    $region2: #{tpu_custom_call.1} parent=1 // pred_check
      _
    $region3: #{tpu_custom_call.1} parent=1 // pred_check_branch
      %12 = sbr.rel (0) target = $region5
    $region4: #{tpu_custom_call.1} parent=1 // pred_region
      %14 = vsyncadd [#allocation3], 0
      %s16 = sshll.u32 %s0, 4
      %s17 = int_to_ptr.hbm [resolvable:$true] %s16
      %s18 = sshll.u32 [#allocation2], 4
      %s19 = int_to_ptr.vmem [resolvable:$true] %s18
      %21 = dma.hbm_to_vmem [thread:$0]  %s17, 2176, %s19, [#allocation3]
    $region5: #{tpu_custom_call.1} parent=1 // pred_fallthru
      _
    // Predicated region
    $region6: #{tpu_custom_call.1} parent=1 // pred_check
      _
    $region7: #{tpu_custom_call.1} parent=1 // pred_check_branch
      %23 = sbr.rel (0) target = $region9
    $region8: #{tpu_custom_call.1} parent=1 // pred_region
      %25 = vsyncadd [#allocation6], 0
      %s27 = sshll.u32 %s1, 4
      %s28 = int_to_ptr.hbm [resolvable:$true] %s27
      %s29 = sshll.u32 [#allocation5], 4
      %s30 = int_to_ptr.vmem [resolvable:$true] %s29
      %32 = dma.hbm_to_vmem [thread:$0]  %s28, 272, %s30, [#allocation6]
    $region9: #{tpu_custom_call.1} parent=1 // pred_fallthru
      _
    // Predicated region
    $region10: #{tpu_custom_call.1} parent=1 // pred_check
      _
    $region11: #{tpu_custom_call.1} parent=1 // pred_check_branch
      %34 = sbr.rel (0) target = $region13
    $region12: #{tpu_custom_call.1} parent=1 // pred_region
      %36 = vsyncadd [#allocation6], 0
      %s38 = sshll.u32 %s2, 4
      %s39 = int_to_ptr.hbm [resolvable:$true] %s38
      %s40 = sshll.u32 [#allocation7], 4
      %s41 = int_to_ptr.vmem [resolvable:$true] %s40
      %43 = dma.hbm_to_vmem [thread:$0]  %s39, 272, %s41, [#allocation6]
    $region13: #{tpu_custom_call.1} parent=1 // pred_fallthru
      _
    // Predicated region
    $region14: #{tpu_custom_call.1} parent=1 // pred_check
      _
    $region15: #{tpu_custom_call.1} parent=1 // pred_check_branch
      %45 = sbr.rel (0) target = $region17
    $region16: #{tpu_custom_call.1} parent=1 // pred_region
      %47 = dma.done [#allocation3], 2176
    $region17: #{tpu_custom_call.1} parent=1 // pred_fallthru
      _
    // Predicated region
    $region18: #{tpu_custom_call.1} parent=1 // pred_check
      _
    $region19: #{tpu_custom_call.1} parent=1 // pred_check_branch
      %49 = sbr.rel (0) target = $region21
    $region20: #{tpu_custom_call.1} parent=1 // pred_region
      %51 = dma.done [#allocation6], 272
    $region21: #{tpu_custom_call.1} parent=1 // pred_fallthru
      _
    // Predicated region
    $region22: #{tpu_custom_call.1} parent=1 // pred_check
      _
    $region23: #{tpu_custom_call.1} parent=1 // pred_check_branch
      %53 = sbr.rel (0) target = $region25
    $region24: #{tpu_custom_call.1} parent=1 // pred_region
      %55 = dma.done [#allocation6], 272
    $region25: #{tpu_custom_call.1} parent=1 // pred_fallthru
      _
    %v56 = vld [vmem:[#allocation2] sm:$0xff]
    %v57 = vld [vmem:[#allocation2 + $0x8] sm:$0xff]
    %v58 = vld [vmem:[#allocation2 + $0x10] sm:$0xff]
    %v59 = vld [vmem:[#allocation2 + $0x18] sm:$0xff]
    %v60 = vld [vmem:[#allocation2 + $0x20] sm:$0xff]
    %v61 = vld [vmem:[#allocation2 + $0x28] sm:$0xff]
    %v62 = vld [vmem:[#allocation2 + $0x30] sm:$0xff]
    %v63 = vld [vmem:[#allocation2 + $0x38] sm:$0xff]
    %v64 = vld [vmem:[#allocation2 + $0x40] sm:$0xff]
    %v65 = vld [vmem:[#allocation2 + $0x48] sm:$0xff]
    %v66 = vld [vmem:[#allocation2 + $0x50] sm:$0xff]
    %v67 = vld [vmem:[#allocation2 + $0x58] sm:$0xff]
    %v68 = vld [vmem:[#allocation2 + $0x60] sm:$0xff]
    %v69 = vld [vmem:[#allocation2 + $0x68] sm:$0xff]
    %v70 = vld [vmem:[#allocation2 + $0x70] sm:$0xff]
    %v71 = vld [vmem:[#allocation2 + $0x78] sm:$0xff]
    %v72 = vld [vmem:[#allocation2 + $0x80] sm:$0xff]
    %v73 = vld [vmem:[#allocation5] sm:$0xff]
    %v74 = vld [vmem:[#allocation5 + $0x8] sm:$0xff]
    %v75 = vld [vmem:[#allocation5 + $0x10] sm:$0x1]
    %v79 = vperm.slane %v73, 0
    %v80 = vperm.slane %v73, 1
    %v81 = vperm.slane %v73, 2
    %v82 = vperm.slane %v73, 3
    %v83 = vperm.slane %v73, 4
    %v84 = vperm.slane %v73, 5
    %v85 = vperm.slane %v73, 6
    %v86 = vperm.slane %v73, 7
    %v87 = vperm.slane %v74, 0
    %v88 = vperm.slane %v74, 1
    %v89 = vperm.slane %v74, 2
    %v90 = vperm.slane %v74, 3
    %v91 = vperm.slane %v74, 4
    %v92 = vperm.slane %v74, 5
    %v93 = vperm.slane %v74, 6
    %v94 = vperm.slane %v74, 7
    %v95 = vperm.slane %v75, 0
    %v113 = vmul.f32 %v56, %v79
    %v114 = vmul.f32 %v57, %v80
    %v115 = vmul.f32 %v58, %v81
    %v116 = vmul.f32 %v59, %v82
    %v117 = vmul.f32 %v60, %v83
    %v118 = vmul.f32 %v61, %v84
    %v119 = vmul.f32 %v62, %v85
    %v120 = vmul.f32 %v63, %v86
    %v121 = vmul.f32 %v64, %v87
    %v122 = vmul.f32 %v65, %v88
    %v123 = vmul.f32 %v66, %v89
    %v124 = vmul.f32 %v67, %v90
    %v125 = vmul.f32 %v68, %v91
    %v126 = vmul.f32 %v69, %v92
    %v127 = vmul.f32 %v70, %v93
    %v128 = vmul.f32 %v71, %v94
    %v129 = vmul.f32 %v72, %v95
    %v130 = vld [vmem:[#allocation7] sm:$0xff]
    %v131 = vld [vmem:[#allocation7 + $0x8] sm:$0xff]
    %v132 = vld [vmem:[#allocation7 + $0x10] sm:$0x1]
    %v136 = vperm.slane %v130, 0
    %v137 = vperm.slane %v130, 1
    %v138 = vperm.slane %v130, 2
    %v139 = vperm.slane %v130, 3
    %v140 = vperm.slane %v130, 4
    %v141 = vperm.slane %v130, 5
    %v142 = vperm.slane %v130, 6
    %v143 = vperm.slane %v130, 7
    %v144 = vperm.slane %v131, 0
    %v145 = vperm.slane %v131, 1
    %v146 = vperm.slane %v131, 2
    %v147 = vperm.slane %v131, 3
    %v148 = vperm.slane %v131, 4
    %v149 = vperm.slane %v131, 5
    %v150 = vperm.slane %v131, 6
    %v151 = vperm.slane %v131, 7
    %v152 = vperm.slane %v132, 0
    %v170 = vadd.f32 %v113, %v136
    %v171 = vadd.f32 %v114, %v137
    %v172 = vadd.f32 %v115, %v138
    %v173 = vadd.f32 %v116, %v139
    %v174 = vadd.f32 %v117, %v140
    %v175 = vadd.f32 %v118, %v141
    %v176 = vadd.f32 %v119, %v142
    %v177 = vadd.f32 %v120, %v143
    %v178 = vadd.f32 %v121, %v144
    %v179 = vadd.f32 %v122, %v145
    %v180 = vadd.f32 %v123, %v146
    %v181 = vadd.f32 %v124, %v147
    %v182 = vadd.f32 %v125, %v148
    %v183 = vadd.f32 %v126, %v149
    %v184 = vadd.f32 %v127, %v150
    %v185 = vadd.f32 %v128, %v151
    %v186 = vadd.f32 %v129, %v152
    %187 = vst [vmem:[#allocation8] sm:$0xff] %v170
    %188 = vst [vmem:[#allocation8 + $0x8] sm:$0xff] %v171
    %189 = vst [vmem:[#allocation8 + $0x10] sm:$0xff] %v172
    %190 = vst [vmem:[#allocation8 + $0x18] sm:$0xff] %v173
    %191 = vst [vmem:[#allocation8 + $0x20] sm:$0xff] %v174
    %192 = vst [vmem:[#allocation8 + $0x28] sm:$0xff] %v175
    %193 = vst [vmem:[#allocation8 + $0x30] sm:$0xff] %v176
    %194 = vst [vmem:[#allocation8 + $0x38] sm:$0xff] %v177
    %195 = vst [vmem:[#allocation8 + $0x40] sm:$0xff] %v178
    %196 = vst [vmem:[#allocation8 + $0x48] sm:$0xff] %v179
    %197 = vst [vmem:[#allocation8 + $0x50] sm:$0xff] %v180
    %198 = vst [vmem:[#allocation8 + $0x58] sm:$0xff] %v181
    %199 = vst [vmem:[#allocation8 + $0x60] sm:$0xff] %v182
    %200 = vst [vmem:[#allocation8 + $0x68] sm:$0xff] %v183
    %201 = vst [vmem:[#allocation8 + $0x70] sm:$0xff] %v184
    %202 = vst [vmem:[#allocation8 + $0x78] sm:$0xff] %v185
    %203 = vst [vmem:[#allocation8 + $0x80] sm:$0xff] %v186
    // Predicated region
    $region26: #{tpu_custom_call.1} parent=1 // pred_check
      _
    $region27: #{tpu_custom_call.1} parent=1 // pred_check_branch
      %205 = sbr.rel (0) target = $region29
    $region28: #{tpu_custom_call.1} parent=1 // pred_region
      %207 = vsyncadd [#allocation4], 0
      %s209 = sshll.u32 [#allocation8], 4
      %s210 = int_to_ptr.vmem [resolvable:$true] %s209
      %s211 = sshll.u32 %s3, 4
      %s212 = int_to_ptr.hbm [resolvable:$true] %s211
      %214 = dma.vmem_to_hbm [thread:$0]  %s210, 2176, %s212, [#allocation4]
    $region29: #{tpu_custom_call.1} parent=1 // pred_fallthru
      _
    // Predicated region
    $region30: #{tpu_custom_call.1} parent=1 // pred_check
      _
    $region31: #{tpu_custom_call.1} parent=1 // pred_check_branch
      %216 = sbr.rel (0) target = $region33
    $region32: #{tpu_custom_call.1} parent=1 // pred_region
      %218 = dma.done [#allocation4], 2176
    $region33: #{tpu_custom_call.1} parent=1 // pred_fallthru
      _
    %219 = vsyncpa [#allocation3], 1
    %220 = vsyncpa [#allocation6], 1
    %221 = vsyncpa [#allocation4], 1

</llo_original>
